<compile_context>
chip_gen: v7x
topology: tpu7x:2x2x1
jax: 0.10.0
libtpu: 0.0.40
codegen_flags: <defaults>
</compile_context>

<pallas_src>
import math

import jax
import jax.numpy as jnp
from jax.experimental import pallas as pl
from jax.experimental.pallas import tpu as pltpu


def _round_up(a: int, b: int) -> int:
    return ((a + b - 1) // b) * b


def _cdiv(a: int, b: int) -> int:
    return (a + b - 1) // b


# ----------------------------- kernels --------------------------------------
# All kernels consume the weight pre-transposed to (K, N): the contraction dim
# lands on the RHS sublanes, so the MXU needs no per-tile transpose.

def _mm_kernel_f32(x_ref, w_ref, o_ref):
    # float32 output, no bias: accumulate directly into the resident output
    # block (frees tm*tn*4 bytes of VMEM and drops the finalize copy).
    @pl.when(pl.program_id(2) == 0)
    def _():
        o_ref[...] = jnp.zeros_like(o_ref)

    o_ref[...] += jnp.dot(x_ref[...], w_ref[...],
                          preferred_element_type=jnp.float32)


def _mm_bias_kernel_f32(x_ref, w_ref, b_ref, o_ref):
    # float32 output with bias: seed the accumulator with the bias row.
    @pl.when(pl.program_id(2) == 0)
    def _():
        o_ref[...] = jnp.broadcast_to(b_ref[...], o_ref.shape)

    o_ref[...] += jnp.dot(x_ref[...], w_ref[...],
                          preferred_element_type=jnp.float32)


def _mm_kernel_acc(x_ref, w_ref, o_ref, acc_ref):
    # Narrow (bf16/f16/...) output, no bias: f32 VMEM accumulator + final cast.
    k = pl.program_id(2)

    @pl.when(k == 0)
    def _():
        acc_ref[...] = jnp.zeros_like(acc_ref)

    acc_ref[...] += jnp.dot(x_ref[...], w_ref[...],
                            preferred_element_type=jnp.float32)

    @pl.when(k == pl.num_programs(2) - 1)
    def _():
        o_ref[...] = acc_ref[...].astype(o_ref.dtype)


def _mm_bias_kernel_acc(x_ref, w_ref, b_ref, o_ref, acc_ref):
    k = pl.program_id(2)

    @pl.when(k == 0)
    def _():
        acc_ref[...] = jnp.zeros_like(acc_ref)

    acc_ref[...] += jnp.dot(x_ref[...], w_ref[...],
                            preferred_element_type=jnp.float32)

    @pl.when(k == pl.num_programs(2) - 1)
    def _():
        o_ref[...] = (acc_ref[...] + b_ref[...]).astype(o_ref.dtype)


# --------------------------- tile selection ----------------------------------

def _tpu_vmem_capacity_bytes() -> int:
    try:
        info = pltpu.get_tpu_info()
        cap = int(getattr(info, "vmem_capacity_bytes", 0) or 0)
        if cap > 0:
            return cap
    except Exception:
        pass
    return 64 * 1024 * 1024  # conservative fallback (v7x: 64 MiB per TC)


def _select_tiles(m, k, n_pad, in_bytes, out_bytes, need_acc, vmem_cap):
    """Generation/dtype-aware tile sizes kept inside a VMEM working-set budget."""
    sub = {4: 8, 2: 16, 1: 32}.get(in_bytes, 8)

    # Double-buffered working-set budget; leave headroom for Mosaic internals.
    budget = min(int(vmem_cap * 0.55), 80 * 1024 * 1024)

    # v5e/v6e (128 MiB physical VMEM) afford a larger M tile than v7x (64 MiB).
    big_vmem = vmem_cap >= 96 * 1024 * 1024
    tm = 1024 if big_vmem else 512
    tn = 1024
    tk = 1024

    # Clamp to the problem.
    tm = max(sub, min(tm, _round_up(m, sub)))
    tn = max(128, (min(tn, n_pad) // 128) * 128)
    full_k = k <= tk
    if full_k:
        tk = k

    def working_set(tm_, tn_, tk_):
        ws = 2 * (tm_ * tk_ + tk_ * tn_) * in_bytes + 2 * tm_ * tn_ * out_bytes
        if need_acc:
            ws += tm_ * tn_ * 4
        return ws

    # Shrink until the double-buffered working set fits the budget.
    while working_set(tm, tn, tk) > budget:
        if not full_k and tk > 512:
            tk //= 2
        elif tn > 256:
            tn = max(128, ((tn // 2) // 128) * 128)
        elif tm > 2 * sub:
            tm = max(sub, ((tm // 2) // sub) * sub)
        elif not full_k and tk > 256:
            tk //= 2
        elif tn > 128:
            tn = max(128, ((tn // 2) // 128) * 128)
        else:
            break

    # Megacore (v7x: 2 TensorCores): keep >= 2 parallel grid steps.  Prefer
    # splitting N (each core reads half of W -> W streamed once per chip) and
    # only then M (which would double weight HBM traffic).
    if _cdiv(m, tm) * _cdiv(n_pad, tn) < 2:
        if tn >= 256 and n_pad >= 256:
            tn = max(128, ((tn // 2) // 128) * 128)
        elif tm >= 2 * sub:
            tm = max(sub, ((tm // 2) // sub) * sub)

    return tm, tn, tk, full_k


# ------------------------------- wrapper --------------------------------------

def linear_forward(x, weight, bias=None):
    """y = x @ weight.T + bias, matching torch.nn.functional.linear.

    x:      (*, input_dim)
    weight: (output_dim, input_dim)   (torch layout)
    bias:   (output_dim,) or None
    """
    out_dim, in_dim = weight.shape
    assert x.shape[-1] == in_dim

    lead_shape = x.shape[:-1]
    m = int(math.prod(lead_shape)) if lead_shape else 1
    x2d = x.reshape(m, in_dim)

    out_dtype = x.dtype
    in_bytes = jnp.dtype(x.dtype).itemsize
    out_bytes = jnp.dtype(out_dtype).itemsize
    f32_out = jnp.dtype(out_dtype) == jnp.dtype(jnp.float32)
    need_acc = not f32_out

    n_pad = _round_up(out_dim, 128)        # lane-aligned output features
    vmem_cap = _tpu_vmem_capacity_bytes()

    tm, tn, tk, full_k = _select_tiles(
        m, in_dim, n_pad, in_bytes, out_bytes, need_acc, vmem_cap)

    # K tiling: a ragged K tile would mix garbage into the contraction, so the
    # (padded) K extent must be an exact multiple of tk.
    if full_k:
        k_pad = in_dim
        grid_k = 1
    else:
        grid_k = _cdiv(in_dim, tk)
        # Keep 256-deep MXU pushes while minimizing zero K-padding.
        tk = _round_up(_cdiv(in_dim, grid_k), 256)
        k_pad = grid_k * tk

    grid_m = _cdiv(m, tm)                  # ragged last M block handled by Pallas
    grid_n = _cdiv(n_pad, tn)
    grid = (grid_m, grid_n, grid_k)

    # One-time weight transpose to (K, N) so jnp.dot needs no per-tile relayout.
    # TODO(synk): cache W^T (and its padding) across calls instead of paying one
    # extra HBM pass over W per forward.
    wt = weight.T
    if k_pad != in_dim or n_pad != out_dim:
        wt = jnp.pad(wt, ((0, k_pad - in_dim), (0, n_pad - out_dim)))
    if k_pad != in_dim:
        # Zero K-padding is mathematically inert; M needs no padding.
        x2d = jnp.pad(x2d, ((0, 0), (0, k_pad - in_dim)))

    x_spec = pl.BlockSpec((tm, tk), lambda i, j, k: (i, k))
    w_spec = pl.BlockSpec((tk, tn), lambda i, j, k: (k, j))
    o_spec = pl.BlockSpec((tm, tn), lambda i, j, k: (i, j))

    cost = pl.CostEstimate(
        flops=2 * m * in_dim * out_dim,
        transcendentals=0,
        bytes_accessed=(m * in_dim * in_bytes
                        + out_dim * in_dim * jnp.dtype(weight.dtype).itemsize
                        + m * out_dim * out_bytes),
    )

    vmem_limit = int(min(vmem_cap * 0.8, 100 * 1024 * 1024))

    common = dict(
        out_shape=jax.ShapeDtypeStruct((m, n_pad), out_dtype),
        compiler_params=pltpu.CompilerParams(
            dimension_semantics=("parallel", "parallel", "arbitrary"),
            vmem_limit_bytes=vmem_limit,
        ),
        cost_estimate=cost,
    )

    scratch = [] if f32_out else [pltpu.VMEM((tm, tn), jnp.float32)]

    if bias is None:
        kernel = _mm_kernel_f32 if f32_out else _mm_kernel_acc
        out = pl.pallas_call(
            kernel,
            grid_spec=pltpu.PrefetchScalarGridSpec(
                num_scalar_prefetch=0,
                grid=grid,
                in_specs=[x_spec, w_spec],
                out_specs=o_spec,
                scratch_shapes=scratch,
            ),
            **common,
        )(x2d, wt)
    else:
        b_row = bias.astype(jnp.float32).reshape(1, out_dim)
        if n_pad != out_dim:
            b_row = jnp.pad(b_row, ((0, 0), (0, n_pad - out_dim)))
        b_spec = pl.BlockSpec((1, tn), lambda i, j, k: (0, j))
        kernel = _mm_bias_kernel_f32 if f32_out else _mm_bias_kernel_acc
        out = pl.pallas_call(
            kernel,
            grid_spec=pltpu.PrefetchScalarGridSpec(
                num_scalar_prefetch=0,
                grid=grid,
                in_specs=[x_spec, w_spec, b_spec],
                out_specs=o_spec,
                scratch_shapes=scratch,
            ),
            **common,
        )(x2d, wt, b_row)

    if n_pad != out_dim:
        out = out[:, :out_dim]
    return out.reshape(*lead_shape, out_dim)


def init_linear_params(key, input_dim, output_dim, bias=True, dtype=jnp.float32):
    """Init matching fairseq2 Linear.reset_parameters:
    kaiming_uniform_(a=sqrt(5)) on weight -> U(-1/sqrt(fan_in), 1/sqrt(fan_in)),
    bias ~ U(-1/sqrt(input_dim), 1/sqrt(input_dim)).
    """
    kw, kb = jax.random.split(key)
    bound = 1.0 / math.sqrt(input_dim) if input_dim > 0 else 0.0
    weight = jax.random.uniform(
        kw, (output_dim, input_dim), dtype=dtype, minval=-bound, maxval=bound
    )
    b = None
    if bias:
        b = jax.random.uniform(
            kb, (output_dim,), dtype=dtype, minval=-bound, maxval=bound
        )
    return weight, b


if __name__ == "__main__":
    key = jax.random.PRNGKey(0)
    k_x, k_p = jax.random.split(key)

    batch, seq, input_dim, output_dim = 2, 8, 32, 64
    x = jax.random.normal(k_x, (batch, seq, input_dim), dtype=jnp.float32)

    weight, bias = init_linear_params(k_p, input_dim, output_dim, bias=True)

    # With bias.
    y = linear_forward(x, weight, bias)
    y = jax.block_until_ready(y)
    y_ref = x @ weight.T + bias
    assert y.shape == (batch, seq, output_dim)
    assert jnp.allclose(y, y_ref, atol=1e-5, rtol=1e-5)

    # Without bias.
    y_nb = linear_forward(x, weight, None)
    y_nb = jax.block_until_ready(y_nb)
    assert jnp.allclose(y_nb, x @ weight.T, atol=1e-5, rtol=1e-5)

    print("KERNEL_OK")
</pallas_src>

<mosaic_0001>
module attributes {stable_mosaic.version = 11 : i64} {
  func.func @_mm_bias_kernel_f32(%arg0: i32, %arg1: i32, %arg2: i32, %arg3: memref<8x32xf32, #tpu.memory_space<vmem>>, %arg4: memref<32x128xf32, #tpu.memory_space<vmem>>, %arg5: memref<1x128xf32, #tpu.memory_space<vmem>>, %arg6: memref<8x128xf32, #tpu.memory_space<vmem>>) attributes {dimension_semantics = [#tpu.dimension_semantics<parallel>, #tpu.dimension_semantics<parallel>, #tpu.dimension_semantics<arbitrary>], iteration_bounds = array<i64: 2, 1, 1>, scalar_prefetch = 0 : i64, scratch_operands = 0 : i64, tpu.core_type = #tpu.core_type<tc>, window_params = [{transform_indices = @transform_0, window_bounds = array<i64: 8, 32>}, {transform_indices = @transform_1, window_bounds = array<i64: 32, 128>}, {transform_indices = @transform_2, window_bounds = array<i64: 1, 128>}, {transform_indices = @transform_3, window_bounds = array<i64: 8, 128>}]} {
    %c0_i32 = arith.constant 0 : i32
    %0 = arith.cmpi eq, %arg2, %c0_i32 : i32
    %1 = arith.extui %0 : i1 to i32
    %c0_i32_0 = arith.constant 0 : i32
    %2 = arith.cmpi ne, %1, %c0_i32_0 : i32
    scf.if %2 {
      %c0_8 = arith.constant 0 : index
      %c0_9 = arith.constant 0 : index
      %9 = vector.load %arg5[%c0_8, %c0_9] : memref<1x128xf32, #tpu.memory_space<vmem>>, vector<1x128xf32>
      %10 = vector.shape_cast %9 : vector<1x128xf32> to vector<1x128xf32>
      %11 = vector.broadcast %10 : vector<1x128xf32> to vector<8x128xf32>
      %c0_10 = arith.constant 0 : index
      %c0_11 = arith.constant 0 : index
      %12 = vector.load %arg6[%c0_10, %c0_11] : memref<8x128xf32, #tpu.memory_space<vmem>>, vector<8x128xf32>
      tpu.vector_store %arg6[%c0_10, %c0_11], %11 {strides = array<i32>} : memref<8x128xf32, #tpu.memory_space<vmem>>, vector<8x128xf32>,
    } else {
    }
    %c0 = arith.constant 0 : index
    %c0_1 = arith.constant 0 : index
    %3 = vector.load %arg6[%c0, %c0_1] : memref<8x128xf32, #tpu.memory_space<vmem>>, vector<8x128xf32>
    %c0_2 = arith.constant 0 : index
    %c0_3 = arith.constant 0 : index
    %4 = vector.load %arg3[%c0_2, %c0_3] : memref<8x32xf32, #tpu.memory_space<vmem>>, vector<8x32xf32>
    %c0_4 = arith.constant 0 : index
    %c0_5 = arith.constant 0 : index
    %5 = vector.load %arg4[%c0_4, %c0_5] : memref<32x128xf32, #tpu.memory_space<vmem>>, vector<32x128xf32>
    %cst = arith.constant dense<0.000000e+00> : vector<8x128xf32>
    %6 = tpu.matmul %4, %5, %cst {dimension_numbers = #tpu.dot_dimension_numbers<[1], [0], [0], [1], [0, 0, 1, 1], [], []>} : vector<8x32xf32>, vector<32x128xf32>, vector<8x128xf32> -> vector<8x128xf32>
    %7 = arith.addf %3, %6 : vector<8x128xf32>
    %c0_6 = arith.constant 0 : index
    %c0_7 = arith.constant 0 : index
    %8 = vector.load %arg6[%c0_6, %c0_7] : memref<8x128xf32, #tpu.memory_space<vmem>>, vector<8x128xf32>
    tpu.vector_store %arg6[%c0_6, %c0_7], %7 {strides = array<i32>} : memref<8x128xf32, #tpu.memory_space<vmem>>, vector<8x128xf32>,
    return
  }
  func.func @transform_0(%arg0: i32, %arg1: i32, %arg2: i32) -> (i32, i32) {
    %c0_i32 = arith.constant 0 : i32
    return %arg0, %arg2 : i32, i32
  }
  func.func @transform_1(%arg0: i32, %arg1: i32, %arg2: i32) -> (i32, i32) {
    %c0_i32 = arith.constant 0 : i32
    return %arg2, %arg1 : i32, i32
  }
  func.func @transform_2(%arg0: i32, %arg1: i32, %arg2: i32) -> (i32, i32) {
    %c0_i32 = arith.constant 0 : i32
    %c0_i32_0 = arith.constant 0 : i32
    return %c0_i32, %arg1 : i32, i32
  }
  func.func @transform_3(%arg0: i32, %arg1: i32, %arg2: i32) -> (i32, i32) {
    %c0_i32 = arith.constant 0 : i32
    return %arg0, %arg1 : i32, i32
  }
}

</mosaic_0001>

<llo_original>
// kernel: tpu_custom_call.1
$region0: #{tpu_custom_call.1}
  #allocation0 [shape = 'u32[]', space=smem, size = 0x4, offset = 0x4, fixed_abs, tag = 'smem constant byte address 0x4 - core index']
  #allocation1 [shape = 'u32[144,128]{1,0:T(1,128)}', space=vmem, size = 0x12000, scoped, tag = 'internal scratch']
  %s0 = inlined_call_operand.hbm [shape: f32[16,32], index: 0, kind: input, shape index: {}]
  %s1 = inlined_call_operand.hbm [shape: f32[32,128], index: 1, kind: input, shape index: {}]
  %s2 = inlined_call_operand.vmem [shape: f32[1,128], index: 2, kind: input, shape index: {}]
  %s3 = inlined_call_operand.hbm [shape: f32[16,128], index: 3, kind: output, shape index: {}]
  %s4 = sld [smem:[#allocation0]]
  $region57: #{tpu_custom_call.1} parent=0
    _
  %s6 = ssub.s32 1, %s4
  %s7 = scalar_select 0, %s6, %s4
  $region1: #{tpu_custom_call.1} parent=0
    #allocation2 [shape = 'u8[8192]{0}', space=vmem, size = 0x2000, scoped, tag = 'input window, operand 0']
    #allocation3 [shape = 's32[2]{0}', space=sflag, size = 0x8, scoped, tag = 'scoped memory for tpu_custom_call.1']
    #allocation4 [shape = 's32[2]{0}', space=sflag, size = 0x8, scoped, tag = 'scoped memory for tpu_custom_call.1']
    #allocation5 [shape = 'u8[16384]{0}', space=vmem, size = 0x4000, scoped, tag = 'input window, operand 1, single buffered']
    #allocation6 [shape = 's32[1]{0}', space=sflag, size = 0x4, scoped, tag = 'scoped memory for tpu_custom_call.1']
    #allocation7 [shape = 'u8[8192]{0}', space=vmem, size = 0x2000, scoped, tag = 'output window, operand 0']
    %8 = vsyncpa [#allocation3], 0
    %s9 = scalar_lea.sflag [#allocation3], 1
    %10 = vsyncpa %s9, 0
    %11 = vsyncpa [#allocation6], 0
    %12 = vsyncpa [#allocation4], 0
    %s13 = scalar_lea.sflag [#allocation4], 1
    %14 = vsyncpa %s13, 0
    loop: start=0, step=1, limit=4
    $region2: #{tpu_custom_call.1} parent=1 // loop_pre_header
      _
    $region3: #{tpu_custom_call.1} parent=1 // loop_header
      %s16 = sphi 0, %s20
      %p17 = scmp.ge.s32.totalorder %s16, 4
      %s23 = sphi 0, %s42
      %s24 = sphi 0, %s38
      %s25 = sphi 0, %s34
      %s26 = sphi 0, %s23
      %s27 = sphi 0, %s24
      %s28 = sphi 0, %s25
      %s29 = sphi 0, %s26
      %s30 = sphi 0, %s27
      %s31 = sphi 0, %s28
      %s47 = sphi 0, %s49
      %s50 = sphi 0, %s47
      %s51 = sphi 0, %s50
      %s67 = sphi 0, %s51
      %s75 = sphi 0, %s77
      %s78 = sphi 0, %s75
      %s79 = sphi 0, %s78
      %s95 = sphi 0, %s79
      %s101 = sphi 0, %s103
      %s104 = sphi 0, %s101
      %s105 = sphi 0, %s104
      %s121 = sphi 0, %s105
      %s129 = sphi 0, %s131
      %s132 = sphi 0, %s129
      %s133 = sphi 0, %s132
      %s149 = sphi 0, %s133
    $region4: #{tpu_custom_call.1} parent=1 // loop_header_branch
      %19 = sbr.rel (%p17) target = $region8
    $region5: #{tpu_custom_call.1} parent=1 // loop_body
      %s21 = ssub.s32 %s16, 1
      %s22 = ssub.s32 %s16, 2
      %s32 = sadd.s32 1, %s25
      %p33 = scmp.ge.s32.totalorder %s32, 1
      %s34 = scalar_select %p33, 0, %s32
      %s35 = sadd.s32 1, %s24
      %s36 = scalar_select %p33, %s35, %s24
      %p37 = scmp.ge.s32.totalorder %s36, 1
      %s38 = scalar_select %p37, 0, %s36
      %s39 = sadd.s32 1, %s23
      %s40 = scalar_select %p37, %s39, %s23
      %p41 = scmp.ge.s32.totalorder %s40, 2
      %s42 = scalar_select %p41, 0, %s40
      %s43 = ssub.s32 %s23, %s42
      %s44 = ssub.s32 %s25, %s34
      %s45 = sor.u32 %s43, %s44
      %p46 = scmp.eq.s32.totalorder %s45, 0
      %s48 = sadd.s32 %s47, 1
      %s49 = scalar_select %p46, %s47, %s48
      %p52 = pneg %p46
      %p53 = scmp.eq.s32.totalorder %s16, 1
      %p54 = por %p52, %p53
      %p55 = scmp.ne.s32.totalorder %s47, %s50
      %p56 = scmp.eq.s32.totalorder %s16, 0
      %p57 = por %p55, %p56
      %p58 = scmp.ne.s32.totalorder %s47, %s50
      %p59 = scmp.eq.s32.totalorder %s21, 1
      %p60 = por %p58, %p59
      %p61 = scmp.ne.s32.totalorder %s50, %s51
      %p62 = scmp.eq.s32.totalorder %s21, 0
      %p63 = por %p61, %p62
      %p64 = scmp.ne.s32.totalorder %s50, %s51
      %p65 = scmp.eq.s32.totalorder %s22, 1
      %p66 = por %p64, %p65
      %p68 = scmp.ne.s32.totalorder %s51, %s67
      %p69 = scmp.eq.s32.totalorder %s22, 0
      %p70 = por %p68, %p69
      %s71 = ssub.s32 %s25, %s34
      %s72 = ssub.s32 %s24, %s38
      %s73 = sor.u32 %s71, %s72
      %p74 = scmp.eq.s32.totalorder %s73, 0
      %s76 = sadd.s32 %s75, 1
      %s77 = scalar_select %p74, %s75, %s76
      %p80 = pneg %p74
      %p81 = scmp.eq.s32.totalorder %s16, 1
      %p82 = por %p80, %p81
      %p83 = scmp.ne.s32.totalorder %s75, %s78
      %p84 = scmp.eq.s32.totalorder %s16, 0
      %p85 = por %p83, %p84
      %p86 = scmp.ne.s32.totalorder %s75, %s78
      %p87 = scmp.eq.s32.totalorder %s21, 1
      %p88 = por %p86, %p87
      %p89 = scmp.ne.s32.totalorder %s78, %s79
      %p90 = scmp.eq.s32.totalorder %s21, 0
      %p91 = por %p89, %p90
      %p92 = scmp.ne.s32.totalorder %s78, %s79
      %p93 = scmp.eq.s32.totalorder %s22, 1
      %p94 = por %p92, %p93
      %p96 = scmp.ne.s32.totalorder %s79, %s95
      %p97 = scmp.eq.s32.totalorder %s22, 0
      %p98 = por %p96, %p97
      %s99 = ssub.s32 %s24, %s38
      %p100 = scmp.eq.s32.totalorder %s99, 0
      %s102 = sadd.s32 %s101, 1
      %s103 = scalar_select %p100, %s101, %s102
      %p106 = pneg %p100
      %p107 = scmp.eq.s32.totalorder %s16, 1
      %p108 = por %p106, %p107
      %p109 = scmp.ne.s32.totalorder %s101, %s104
      %p110 = scmp.eq.s32.totalorder %s16, 0
      %p111 = por %p109, %p110
      %p112 = scmp.ne.s32.totalorder %s101, %s104
      %p113 = scmp.eq.s32.totalorder %s21, 1
      %p114 = por %p112, %p113
      %p115 = scmp.ne.s32.totalorder %s104, %s105
      %p116 = scmp.eq.s32.totalorder %s21, 0
      %p117 = por %p115, %p116
      %p118 = scmp.ne.s32.totalorder %s104, %s105
      %p119 = scmp.eq.s32.totalorder %s22, 1
      %p120 = por %p118, %p119
      %p122 = scmp.ne.s32.totalorder %s105, %s121
      %p123 = scmp.eq.s32.totalorder %s22, 0
      %p124 = por %p122, %p123
      %s125 = ssub.s32 %s23, %s42
      %s126 = ssub.s32 %s24, %s38
      %s127 = sor.u32 %s125, %s126
      %p128 = scmp.eq.s32.totalorder %s127, 0
      %s130 = sadd.s32 %s129, 1
      %s131 = scalar_select %p128, %s129, %s130
      %p134 = pneg %p128
      %p135 = scmp.eq.s32.totalorder %s16, 1
      %p136 = por %p134, %p135
      %p137 = scmp.ne.s32.totalorder %s129, %s132
      %p138 = scmp.eq.s32.totalorder %s16, 0
      %p139 = por %p137, %p138
      %p140 = scmp.ne.s32.totalorder %s129, %s132
      %p141 = scmp.eq.s32.totalorder %s21, 1
      %p142 = por %p140, %p141
      %p143 = scmp.ne.s32.totalorder %s132, %s133
      %p144 = scmp.eq.s32.totalorder %s21, 0
      %p145 = por %p143, %p144
      %p146 = scmp.ne.s32.totalorder %s132, %s133
      %p147 = scmp.eq.s32.totalorder %s22, 1
      %p148 = por %p146, %p147
      %p150 = scmp.ne.s32.totalorder %s133, %s149
      %p151 = scmp.eq.s32.totalorder %s22, 0
      %p152 = por %p150, %p151
      %p153 = scmp.le.s32.totalorder 1, %s16
      %p154 = scmp.lt.s32.totalorder %s16, 3
      %p155 = pnand %p153, %p154
      %p156 = pneg %p155
      // Predicated region
      $region9: #{tpu_custom_call.1} parent=5 // pred_check
        _
      $region10: #{tpu_custom_call.1} parent=5 // pred_check_branch
        %158 = sbr.rel (%p155) target = $region12
      $region11: #{tpu_custom_call.1} parent=5 // pred_region
        %s159 = ssub.s32 %s16, 1
        // Predicated region
        $region13: #{tpu_custom_call.1} parent=11 // pred_check
          %p160 = pneg %p91
        $region14: #{tpu_custom_call.1} parent=11 // pred_check_branch
          %162 = sbr.rel (%p160) target = $region16
        $region15: #{tpu_custom_call.1} parent=11 // pred_region
          %s163 = smul.u32 4, %s28
          %s165 = ssub.s32 512, 512
          %166 = vsyncadd [#allocation6], %s165
          %s167 = sadd.s32 %s27, %s163
          %s168 = smul.addr %s167, 128
          %s169 = scalar_lea.hbm %s1, %s168
          %s170 = sshll.u32 [#allocation5], 4
          %s171 = int_to_ptr.vmem [resolvable:$true] %s170
          %176 = dma.hbm_to_vmem [thread:$0]  %s169, 512, %s171, [#allocation6], 128, 128, 8
        $region16: #{tpu_custom_call.1} parent=11 // pred_fallthru
          _
        // Predicated region
        $region17: #{tpu_custom_call.1} parent=11 // pred_check
          %p177 = pneg %p117
        $region18: #{tpu_custom_call.1} parent=11 // pred_check_branch
          %179 = sbr.rel (%p177) target = $region20
        $region19: #{tpu_custom_call.1} parent=11 // pred_region
          %p180 = scmp.lt.s32.totalorder %s27, 0
          %s181 = scalar_select %p180, %s27, 0
          %s182 = scalar_lea.vmem %s2, %s181
        $region20: #{tpu_custom_call.1} parent=11 // pred_fallthru
          _
      $region12: #{tpu_custom_call.1} parent=5 // pred_fallthru
        _
      %p183 = scmp.lt.s32.totalorder %s16, 2
      // Predicated region
      $region21: #{tpu_custom_call.1} parent=5 // pred_check
        %p184 = pneg %p183
      $region22: #{tpu_custom_call.1} parent=5 // pred_check_branch
        %186 = sbr.rel (%p184) target = $region24
      $region23: #{tpu_custom_call.1} parent=5 // pred_region
        // Predicated region
        $region25: #{tpu_custom_call.1} parent=23 // pred_check
          %p187 = pneg %p57
        $region26: #{tpu_custom_call.1} parent=23 // pred_check_branch
          %189 = sbr.rel (%p187) target = $region28
        $region27: #{tpu_custom_call.1} parent=23 // pred_region
          %s190 = sand.u32 %s47, 1
          %s191 = scalar_lea.sflag [#allocation3], %s190
          %s192 = sand.u32 %s47, 1
          %s193 = smul.addr %s192, 8
          %s194 = scalar_lea.vmem [#allocation2], %s193
          %s196 = ssub.s32 128, 128
          %197 = vsyncadd %s191, %s196
          %s198 = sadd.s32 %s25, %s23
          %s199 = smul.addr %s198, 128
          %s200 = scalar_lea.hbm %s0, %s199
          %s202 = sshll.u32 %s194, 4
          %s203 = int_to_ptr.vmem [resolvable:$true] %s202
          %205 = dma.hbm_to_vmem [thread:$0]  %s200, 128, %s203, %s191
        $region28: #{tpu_custom_call.1} parent=23 // pred_fallthru
          _
      $region24: #{tpu_custom_call.1} parent=5 // pred_fallthru
        _
      %p206 = scmp.le.s32.totalorder 1, %s16
      %p207 = scmp.lt.s32.totalorder %s16, 3
      %p208 = pnand %p206, %p207
      %p209 = pneg %p208
      // Predicated region
      $region29: #{tpu_custom_call.1} parent=5 // pred_check
        _
      $region30: #{tpu_custom_call.1} parent=5 // pred_check_branch
        %211 = sbr.rel (%p208) target = $region32
      $region31: #{tpu_custom_call.1} parent=5 // pred_region
        %s212 = ssub.s32 %s16, 1
        %s213 = sand.u32 %s50, 1
        %s214 = scalar_lea.sflag [#allocation3], %s213
        %s215 = sand.u32 %s50, 1
        %s216 = smul.addr %s215, 8
        %s217 = scalar_lea.vmem [#allocation2], %s216
        // Predicated region
        $region33: #{tpu_custom_call.1} parent=31 // pred_check
          %p218 = pneg %p63
        $region34: #{tpu_custom_call.1} parent=31 // pred_check_branch
          %220 = sbr.rel (%p218) target = $region36
        $region35: #{tpu_custom_call.1} parent=31 // pred_region
          %221 = dma.done %s214, 128
        $region36: #{tpu_custom_call.1} parent=31 // pred_fallthru
          _
        // Predicated region
        $region37: #{tpu_custom_call.1} parent=31 // pred_check
          %p222 = pneg %p91
        $region38: #{tpu_custom_call.1} parent=31 // pred_check_branch
          %224 = sbr.rel (%p222) target = $region40
        $region39: #{tpu_custom_call.1} parent=31 // pred_region
          %225 = dma.done [#allocation6], 512
        $region40: #{tpu_custom_call.1} parent=31 // pred_fallthru
          _
        %s226 = sand.u32 %s50, 1
        %s227 = scalar_lea.sflag [#allocation3], %s226
        %s228 = sand.u32 %s50, 1
        %s229 = smul.addr %s228, 8
        %s230 = scalar_lea.vmem [#allocation2], %s229
        %p231 = pneg %p63
        %p232 = pneg %p60
        %p233 = pneg %p91
        %p234 = pneg %p88
        %p235 = scmp.lt.s32.totalorder %s27, 0
        %s236 = scalar_select %p235, %s27, 0
        %s237 = scalar_lea.vmem %s2, %s236
        %p238 = pneg %p117
        %p239 = pneg %p114
        %p240 = pneg %p145
        %p241 = pneg %p142
        %s242 = sand.u32 %s132, 1
        %s243 = scalar_lea.sflag [#allocation4], %s242
        %s244 = sand.u32 %s132, 1
        %s245 = smul.addr %s244, 8
        %s246 = scalar_lea.vmem [#allocation7], %s245
        %s247 = smul.u32 4, %s28
        %p248 = scmp.lt.s32.totalorder %s27, 0
        %s249 = scalar_select %p248, %s27, 0
        %s250 = scalar_lea.vmem %s2, %s249
        %p251 = scmp.eq.s32.totalorder %s28, 0
        // Predicated region
        $region41: #{tpu_custom_call.1} parent=31 // pred_check
          %p252 = pneg %p251
        $region42: #{tpu_custom_call.1} parent=31 // pred_check_branch
          %254 = sbr.rel (%p252) target = $region44
        $region43: #{tpu_custom_call.1} parent=31 // pred_region
          %v255 = vld [vmem:[%s250] sm:$0x1]
          %v257 = vlaneseq
          %v258 = vshrl.u32 %v257, 7
          %v259 = vsub.s32 0, %v258
          %v260 = vrot.slane %v255, %v259
          %262 = vst [vmem:[%s246] sm:$0xff] %v260
        $region44: #{tpu_custom_call.1} parent=31 // pred_fallthru
          _
        %v263 = vld [vmem:[%s246] sm:$0xff]
        %v264 = vld [vmem:[%s217] sm:$0xff]
        %v265 = vld [vmem:[#allocation5] sm:$0xff]
        %v266 = vld [vmem:[#allocation5 + $0x8] sm:$0xff]
        %v267 = vld [vmem:[#allocation5 + $0x10] sm:$0xff]
        %v268 = vld [vmem:[#allocation5 + $0x18] sm:$0xff]
        %vm269 = vcmask 261120
        %v271 = vsel %vm269, %v264, 0
        %273 = vmatprep.subr.mxu0 0.0
        %274 = vmatpush1.msra.mxu0 %v265
        %275 = vmatprep.subr.mxu0 0.0
        %276 = vmatpush1.msra.mxu0 %v266
        %277 = vmatprep.subr.mxu0 0.0
        %278 = vmatpush1.msra.mxu0 %v267
        %279 = vmatprep.subr.mxu0 0.0
        %280 = vmatpush1.msra.mxu0 %v268
        %281 = vmatprep.subr.mxu0 0.0
        %282 = vmatpush1.msra.mxu0 0.0
        %283 = vmatprep.subr.mxu0 0.0
        %284 = vmatpush1.msra.mxu0 0.0
        %285 = vmatprep.subr.mxu0 0.0
        %286 = vmatpush1.msra.mxu0 0.0
        %287 = vmatprep.subr.mxu0 0.0
        %288 = vmatpush1.msra.mxu0 0.0
        %289 = vmatprep.subr.mxu0 0.0
        %290 = vmatpush1.msra.mxu0 0.0
        %291 = vmatprep.subr.mxu0 0.0
        %292 = vmatpush1.msra.mxu0 0.0
        %293 = vmatprep.subr.mxu0 0.0
        %294 = vmatpush1.msra.mxu0 0.0
        %295 = vmatprep.subr.mxu0 0.0
        %296 = vmatpush1.msra.mxu0 0.0
        %297 = vmatprep.subr.mxu0 0.0
        %298 = vmatpush1.msra.mxu0 0.0
        %299 = vmatprep.subr.mxu0 0.0
        %300 = vmatpush1.msra.mxu0 0.0
        %301 = vmatprep.subr.mxu0 0.0
        %302 = vmatpush1.msra.mxu0 0.0
        %303 = vmatprep.subr.mxu0 0.0
        %304 = vmatpush1.msra.mxu0 0.0
        %305 = vmatprep.subr.mxu0 0.0
        %306 = vmatpush1.msra.mxu0 0.0
        %307 = vmatprep.subr.mxu0 0.0
        %308 = vmatpush1.msra.mxu0 0.0
        %309 = vmatprep.subr.mxu0 0.0
        %310 = vmatpush1.msra.mxu0 0.0
        %311 = vmatprep.subr.mxu0 0.0
        %312 = vmatpush1.msra.mxu0 0.0
        %313 = vmatprep.subr.mxu0 0.0
        %314 = vmatpush1.msra.mxu0 0.0
        %315 = vmatprep.subr.mxu0 0.0
        %316 = vmatpush1.msra.mxu0 0.0
        %317 = vmatprep.subr.mxu0 0.0
        %318 = vmatpush1.msra.mxu0 0.0
        %319 = vmatprep.subr.mxu0 0.0
        %320 = vmatpush1.msra.mxu0 0.0
        %321 = vmatprep.subr.mxu0 0.0
        %322 = vmatpush1.msra.mxu0 0.0
        %323 = vmatprep.subr.mxu0 0.0
        %324 = vmatpush1.msra.mxu0 0.0
        %325 = vmatprep.subr.mxu0 0.0
        %326 = vmatpush1.msra.mxu0 0.0
        %327 = vmatprep.subr.mxu0 0.0
        %328 = vmatpush1.msra.mxu0 0.0
        %329 = vmatprep.subr.mxu0 0.0
        %330 = vmatpush1.msra.mxu0 0.0
        %331 = vmatprep.subr.mxu0 0.0
        %332 = vmatpush1.msra.mxu0 0.0
        %333 = vmatprep.subr.mxu0 0.0
        %334 = vmatpush1.msra.mxu0 0.0
        %335 = vmatprep.subr.mxu0 0.0
        %336 = vmatpush1.msra.mxu0 0.0
        %337 = vmatprep.mubr.f32.mxu0 0.0
        %338 = vmatmul.mubr.f32.gmra.mrb[0].mxu0 %v271
        %v339 = vpop.f32.mrb[0].mxu0
        %v340 = vadd.f32 0.0, %v339
        %v341 = vpop.f32.mrb[0].mxu0
        %342 = vdwg.mxu0
        %v343 = vadd.f32 %v263, %v340
        %344 = vst [vmem:[%s246] sm:$0xff] %v343
        %s345 = sand.u32 %s132, 1
        %s346 = scalar_lea.sflag [#allocation4], %s345
        %s347 = sand.u32 %s132, 1
        %s348 = smul.addr %s347, 8
        %s349 = scalar_lea.vmem [#allocation7], %s348
        // Predicated region
        $region45: #{tpu_custom_call.1} parent=31 // pred_check
          %p350 = pneg %p142
        $region46: #{tpu_custom_call.1} parent=31 // pred_check_branch
          %352 = sbr.rel (%p350) target = $region48
        $region47: #{tpu_custom_call.1} parent=31 // pred_region
          %s354 = ssub.s32 128, 128
          %355 = vsyncadd %s346, %s354
          %s356 = sadd.s32 %s27, %s26
          %s357 = smul.addr %s356, 128
          %s358 = scalar_lea.hbm %s3, %s357
          %s360 = sshll.u32 %s349, 4
          %s361 = int_to_ptr.vmem [resolvable:$true] %s360
          %363 = dma.vmem_to_hbm [thread:$0]  %s361, 128, %s358, %s346
        $region48: #{tpu_custom_call.1} parent=31 // pred_fallthru
          _
      $region32: #{tpu_custom_call.1} parent=5 // pred_fallthru
        _
      %p364 = scmp.le.s32.totalorder 2, %s16
      // Predicated region
      $region49: #{tpu_custom_call.1} parent=5 // pred_check
        %p365 = pneg %p364
      $region50: #{tpu_custom_call.1} parent=5 // pred_check_branch
        %367 = sbr.rel (%p365) target = $region52
      $region51: #{tpu_custom_call.1} parent=5 // pred_region
        %s368 = ssub.s32 %s16, 2
        // Predicated region
        $region53: #{tpu_custom_call.1} parent=51 // pred_check
          %p369 = pneg %p148
        $region54: #{tpu_custom_call.1} parent=51 // pred_check_branch
          %371 = sbr.rel (%p369) target = $region56
        $region55: #{tpu_custom_call.1} parent=51 // pred_region
          %s372 = sand.u32 %s133, 1
          %s373 = scalar_lea.sflag [#allocation4], %s372
          %s374 = sand.u32 %s133, 1
          %s375 = smul.addr %s374, 8
          %s376 = scalar_lea.vmem [#allocation7], %s375
          %377 = dma.done %s373, 128
        $region56: #{tpu_custom_call.1} parent=51 // pred_fallthru
          _
      $region52: #{tpu_custom_call.1} parent=5 // pred_fallthru
        _
    $region6: #{tpu_custom_call.1} parent=1 // loop_footer
      %s20 = sadd.s32 1, %s16
    $region7: #{tpu_custom_call.1} parent=1 // loop_footer_branch
      %15 = sbr.rel target = $region3
    $region8: #{tpu_custom_call.1} parent=1 // loop_exit
      _
    %378 = vsyncpa [#allocation3], 1
    %s379 = scalar_lea.sflag [#allocation3], 1
    %380 = vsyncpa %s379, 1
    %381 = vsyncpa [#allocation6], 1
    %382 = vsyncpa [#allocation4], 1
    %s383 = scalar_lea.sflag [#allocation4], 1
    %384 = vsyncpa %s383, 1

</llo_original>
